<compile_context>
chip_gen: v7x
topology: tpu7x:2x2x1
jax: 0.10.0
libtpu: 0.0.40
codegen_flags: <defaults>
</compile_context>

<pallas_src>
import math
from functools import partial

import jax
import jax.numpy as jnp
from jax.experimental import pallas as pl
from jax.experimental.pallas import tpu as pltpu


def _gelu_exact(v):
    # Matches torch.nn.GELU() default (erf-based, not tanh approximation).
    # (tanh/exp would move this to the EUP slot, but changes numerics vs torch.)
    return 0.5 * v * (1.0 + jax.lax.erf(v * (1.0 / math.sqrt(2.0))))


def _round_up(n, m):
    return ((n + m - 1) // m) * m


def mlp_ln_act_kernel(x_ref, cond_ref, w1_ref, b1_ref, w2_ref, b2_ref,
                      gamma_ref, beta_ref, o_ref, *, out_ch, out_ch_padded):
    # h = x @ W1 + b1      (native-dtype MXU operands, f32 accumulation)
    h = jnp.dot(x_ref[...], w1_ref[...], preferred_element_type=jnp.float32)
    h = h + b1_ref[...].astype(jnp.float32)

    # c = GELU(cond) @ W2 + b2
    c = _gelu_exact(cond_ref[...])
    c = jnp.dot(c, w2_ref[...], preferred_element_type=jnp.float32)
    c = c + b2_ref[...].astype(jnp.float32)

    # h * (1 + c) == h + h*c   (one fewer broadcasted add)
    g = h + h * c

    # LayerNorm over the *real* out_ch. Padded columns of g are exact zeros
    # (zero weight columns / zero biases), so plain sums divided by out_ch give
    # the true mean; mask the centered values before the variance.
    inv_n = 1.0 / out_ch
    mu = jnp.sum(g, axis=-1, keepdims=True) * inv_n
    centered = g - mu
    if out_ch_padded != out_ch:
        lane = jax.lax.broadcasted_iota(jnp.int32, g.shape, 1)
        centered = jnp.where(lane < out_ch, centered, 0.0)
    var = jnp.sum(centered * centered, axis=-1, keepdims=True) * inv_n
    scale = gamma_ref[...].astype(jnp.float32) * jax.lax.rsqrt(var + 1e-5)
    h = centered * scale + beta_ref[...].astype(jnp.float32)

    # act; dropout -> identity (eval mode)
    o_ref[...] = _gelu_exact(h).astype(o_ref.dtype)


def _choose_block_b(B, in_p, cond_p, out_p, act_bytes, w_bytes, budget_bytes):
    """Largest multiple-of-8 batch tile that fits the VMEM budget."""
    target = 512 if act_bytes <= 2 else 256
    # aim for >= 2 grid steps when B allows it (v7x has 2 TCs per chip)
    block_b = min(target, _round_up(max(B // 2, 8), 8))

    def vmem_est(bb):
        acts = 2 * bb * (in_p + cond_p + out_p) * act_bytes   # double-buffered tiles
        interm = 3 * bb * out_p * 4                           # f32 h / c / g in-kernel
        weights = (in_p + cond_p) * out_p * w_bytes           # single-buffered
        params = 4 * out_p * 4
        return acts + interm + weights + params

    while block_b > 8 and vmem_est(block_b) > budget_bytes:
        block_b = _round_up(block_b // 2, 8)
    return block_b


@partial(jax.jit, static_argnames=("block_b",))
def mlp_ln_act(x, cond, w1, b1, w2, b2, gamma, beta, block_b=None):
    B, in_ch = x.shape
    Bc, cond_ch = cond.shape
    out_ch = w1.shape[1]
    assert Bc == B and w1.shape[0] == in_ch and w2.shape == (cond_ch, out_ch)

    # lane-dense padding of every channel axis (multiples of 128)
    in_ch_p = _round_up(in_ch, 128)
    cond_ch_p = _round_up(cond_ch, 128)
    out_ch_p = _round_up(out_ch, 128)

    act_bytes = jnp.dtype(x.dtype).itemsize
    w_bytes = jnp.dtype(w1.dtype).itemsize
    if block_b is None:
        # ~32 MiB tile budget keeps us under the explicit 48 MiB scoped limit on
        # every generation (v7x has only 64 MiB physical VMEM).
        block_b = _choose_block_b(B, in_ch_p, cond_ch_p, out_ch_p,
                                  act_bytes, w_bytes, 32 * 1024 * 1024)
    B_pad = _round_up(B, block_b)
    grid = (pl.cdiv(B_pad, block_b),)

    def pad2(a, rows, cols):
        return jnp.pad(a, ((0, rows - a.shape[0]), (0, cols - a.shape[1])))

    x_pd = pad2(x, B_pad, in_ch_p)
    cond_pd = pad2(cond, B_pad, cond_ch_p)
    w1_pd = pad2(w1, in_ch_p, out_ch_p)
    w2_pd = pad2(w2, cond_ch_p, out_ch_p)
    b1_pd = pad2(b1.reshape(1, out_ch), 1, out_ch_p)
    b2_pd = pad2(b2.reshape(1, out_ch), 1, out_ch_p)
    gamma_pd = pad2(gamma.reshape(1, out_ch), 1, out_ch_p)
    beta_pd = pad2(beta.reshape(1, out_ch), 1, out_ch_p)

    row = lambda i: (i, 0)
    const = lambda i: (0, 0)
    # constant-index operands: single-buffer them (halves their VMEM footprint)
    const_spec = lambda shape: pl.BlockSpec(shape, const,
                                            pipeline_mode=pl.Buffered(1))

    kernel = partial(mlp_ln_act_kernel, out_ch=out_ch, out_ch_padded=out_ch_p)
    out = pl.pallas_call(
        kernel,
        out_shape=jax.ShapeDtypeStruct((B_pad, out_ch_p), x.dtype),
        grid_spec=pltpu.PrefetchScalarGridSpec(
            num_scalar_prefetch=0,
            grid=grid,
            in_specs=[
                pl.BlockSpec((block_b, in_ch_p), row),     # x tile
                pl.BlockSpec((block_b, cond_ch_p), row),   # cond tile
                const_spec((in_ch_p, out_ch_p)),           # W1 (in, out)
                const_spec((1, out_ch_p)),                 # b1
                const_spec((cond_ch_p, out_ch_p)),         # W2 (cond, out)
                const_spec((1, out_ch_p)),                 # b2
                const_spec((1, out_ch_p)),                 # LN gamma
                const_spec((1, out_ch_p)),                 # LN beta
            ],
            out_specs=pl.BlockSpec((block_b, out_ch_p), row),
        ),
        compiler_params=pltpu.CompilerParams(
            dimension_semantics=("parallel",),
            vmem_limit_bytes=48 * 1024 * 1024,
        ),
    )(x_pd, cond_pd, w1_pd, b1_pd, w2_pd, b2_pd, gamma_pd, beta_pd)

    # strip batch / lane padding
    return out[:B, :out_ch]


def init_params(key, in_channels, out_channels, cond_channels):
    """Deterministic init mimicking nn.Linear defaults (uniform +-1/sqrt(fan_in))."""
    k1, k2, k3, k4 = jax.random.split(key, 4)
    lim1 = 1.0 / math.sqrt(in_channels)
    lim2 = 1.0 / math.sqrt(cond_channels)
    # stored pre-transposed as (in, out) for the kernel
    w1 = jax.random.uniform(k1, (in_channels, out_channels), jnp.float32, -lim1, lim1)
    b1 = jax.random.uniform(k2, (out_channels,), jnp.float32, -lim1, lim1)
    w2 = jax.random.uniform(k3, (cond_channels, out_channels), jnp.float32, -lim2, lim2)
    b2 = jax.random.uniform(k4, (out_channels,), jnp.float32, -lim2, lim2)
    gamma = jnp.ones((out_channels,), jnp.float32)
    beta = jnp.zeros((out_channels,), jnp.float32)
    return w1, b1, w2, b2, gamma, beta


def reference(x, cond, w1, b1, w2, b2, gamma, beta):
    h = x @ w1 + b1
    c = _gelu_exact(cond) @ w2 + b2
    h = h * (1.0 + c)
    mu = jnp.mean(h, axis=-1, keepdims=True)
    var = jnp.mean((h - mu) ** 2, axis=-1, keepdims=True)
    h = (h - mu) / jnp.sqrt(var + 1e-5)
    h = h * gamma + beta
    return _gelu_exact(h)


if __name__ == "__main__":
    # Small demo shapes, deliberately off the 8/128 grid so the padding and
    # padded-aware LayerNorm paths are exercised.
    B, in_ch, out_ch, cond_ch = 20, 24, 32, 64

    key = jax.random.PRNGKey(0)
    kx, kc, kp = jax.random.split(key, 3)
    x = jax.random.normal(kx, (B, in_ch), jnp.float32)
    cond = jax.random.normal(kc, (B, cond_ch), jnp.float32)
    w1, b1, w2, b2, gamma, beta = init_params(kp, in_ch, out_ch, cond_ch)

    out = mlp_ln_act(x, cond, w1, b1, w2, b2, gamma, beta)
    out = jax.block_until_ready(out)

    ref = reference(x, cond, w1, b1, w2, b2, gamma, beta)
    assert out.shape == (B, out_ch)
    assert jnp.allclose(out, ref, atol=1e-4, rtol=1e-4), "mismatch vs reference"

    print("KERNEL_OK")
</pallas_src>

<mosaic_0001>
module attributes {stable_mosaic.version = 11 : i64} {
  func.func @mlp_ln_act_kernel(%arg0: i32, %arg1: memref<16x128xf32, #tpu.memory_space<vmem>>, %arg2: memref<16x128xf32, #tpu.memory_space<vmem>>, %arg3: memref<128x128xf32, #tpu.memory_space<vmem>>, %arg4: memref<1x128xf32, #tpu.memory_space<vmem>>, %arg5: memref<128x128xf32, #tpu.memory_space<vmem>>, %arg6: memref<1x128xf32, #tpu.memory_space<vmem>>, %arg7: memref<1x128xf32, #tpu.memory_space<vmem>>, %arg8: memref<1x128xf32, #tpu.memory_space<vmem>>, %arg9: memref<16x128xf32, #tpu.memory_space<vmem>>) attributes {dimension_semantics = [#tpu.dimension_semantics<parallel>], iteration_bounds = array<i64: 2>, scalar_prefetch = 0 : i64, scratch_operands = 0 : i64, tpu.core_type = #tpu.core_type<tc>, window_params = [{transform_indices = @transform_0, window_bounds = array<i64: 16, 128>}, {transform_indices = @transform_1, window_bounds = array<i64: 16, 128>}, {pipeline_mode = #tpu.pipeline_mode<synchronous>, transform_indices = @transform_2, window_bounds = array<i64: 128, 128>}, {pipeline_mode = #tpu.pipeline_mode<synchronous>, transform_indices = @transform_3, window_bounds = array<i64: 1, 128>}, {pipeline_mode = #tpu.pipeline_mode<synchronous>, transform_indices = @transform_4, window_bounds = array<i64: 128, 128>}, {pipeline_mode = #tpu.pipeline_mode<synchronous>, transform_indices = @transform_5, window_bounds = array<i64: 1, 128>}, {pipeline_mode = #tpu.pipeline_mode<synchronous>, transform_indices = @transform_6, window_bounds = array<i64: 1, 128>}, {pipeline_mode = #tpu.pipeline_mode<synchronous>, transform_indices = @transform_7, window_bounds = array<i64: 1, 128>}, {transform_indices = @transform_8, window_bounds = array<i64: 16, 128>}]} {
    %c0 = arith.constant 0 : index
    %c0_0 = arith.constant 0 : index
    %0 = vector.load %arg1[%c0, %c0_0] : memref<16x128xf32, #tpu.memory_space<vmem>>, vector<16x128xf32>
    %c0_1 = arith.constant 0 : index
    %c0_2 = arith.constant 0 : index
    %1 = vector.load %arg3[%c0_1, %c0_2] : memref<128x128xf32, #tpu.memory_space<vmem>>, vector<128x128xf32>
    %cst = arith.constant dense<0.000000e+00> : vector<16x128xf32>
    %2 = tpu.matmul %0, %1, %cst {dimension_numbers = #tpu.dot_dimension_numbers<[1], [0], [0], [1], [0, 0, 1, 1], [], []>} : vector<16x128xf32>, vector<128x128xf32>, vector<16x128xf32> -> vector<16x128xf32>
    %c0_3 = arith.constant 0 : index
    %c0_4 = arith.constant 0 : index
    %3 = vector.load %arg4[%c0_3, %c0_4] : memref<1x128xf32, #tpu.memory_space<vmem>>, vector<1x128xf32>
    %4 = vector.broadcast %3 : vector<1x128xf32> to vector<16x128xf32>
    %5 = arith.addf %2, %4 : vector<16x128xf32>
    %c0_5 = arith.constant 0 : index
    %c0_6 = arith.constant 0 : index
    %6 = vector.load %arg2[%c0_5, %c0_6] : memref<16x128xf32, #tpu.memory_space<vmem>>, vector<16x128xf32>
    %cst_7 = arith.constant 5.000000e-01 : f32
    %7 = vector.broadcast %cst_7 : f32 to vector<16x128xf32>
    %8 = arith.mulf %7, %6 : vector<16x128xf32>
    %cst_8 = arith.constant 0.707106769 : f32
    %9 = vector.broadcast %cst_8 : f32 to vector<16x128xf32>
    %10 = arith.mulf %6, %9 : vector<16x128xf32>
    %11 = math.erf %10 : vector<16x128xf32>
    %cst_9 = arith.constant 1.000000e+00 : f32
    %12 = vector.broadcast %cst_9 : f32 to vector<16x128xf32>
    %13 = arith.addf %12, %11 : vector<16x128xf32>
    %14 = arith.mulf %8, %13 : vector<16x128xf32>
    %c0_10 = arith.constant 0 : index
    %c0_11 = arith.constant 0 : index
    %15 = vector.load %arg5[%c0_10, %c0_11] : memref<128x128xf32, #tpu.memory_space<vmem>>, vector<128x128xf32>
    %cst_12 = arith.constant dense<0.000000e+00> : vector<16x128xf32>
    %16 = tpu.matmul %14, %15, %cst_12 {dimension_numbers = #tpu.dot_dimension_numbers<[1], [0], [0], [1], [0, 0, 1, 1], [], []>} : vector<16x128xf32>, vector<128x128xf32>, vector<16x128xf32> -> vector<16x128xf32>
    %c0_13 = arith.constant 0 : index
    %c0_14 = arith.constant 0 : index
    %17 = vector.load %arg6[%c0_13, %c0_14] : memref<1x128xf32, #tpu.memory_space<vmem>>, vector<1x128xf32>
    %18 = vector.broadcast %17 : vector<1x128xf32> to vector<16x128xf32>
    %19 = arith.addf %16, %18 : vector<16x128xf32>
    %20 = arith.mulf %5, %19 : vector<16x128xf32>
    %21 = arith.addf %5, %20 : vector<16x128xf32>
    %cst_15 = arith.constant dense<0.000000e+00> : vector<16xf32>
    %22 = vector.multi_reduction <add>, %21, %cst_15 [1] : vector<16x128xf32> to vector<16xf32>
    %23 = vector.shape_cast %22 : vector<16xf32> to vector<16x1xf32>
    %cst_16 = arith.constant 3.125000e-02 : f32
    %24 = vector.broadcast %cst_16 : f32 to vector<16x1xf32>
    %25 = arith.mulf %23, %24 : vector<16x1xf32>
    %26 = vector.broadcast %25 : vector<16x1xf32> to vector<16x128xf32>
    %27 = arith.subf %21, %26 : vector<16x128xf32>
    %28 = tpu.iota {dimensions = array<i32: 1>} : vector<16x128xi32>
    %c32_i32 = arith.constant 32 : i32
    %29 = vector.broadcast %c32_i32 : i32 to vector<16x128xi32>
    %30 = arith.cmpi slt, %28, %29 : vector<16x128xi32>
    %cst_17 = arith.constant 0.000000e+00 : f32
    %31 = vector.broadcast %cst_17 : f32 to vector<16x128xf32>
    %32 = arith.select %30, %27, %31 : vector<16x128xi1>, vector<16x128xf32>
    %33 = arith.mulf %32, %32 : vector<16x128xf32>
    %cst_18 = arith.constant dense<0.000000e+00> : vector<16xf32>
    %34 = vector.multi_reduction <add>, %33, %cst_18 [1] : vector<16x128xf32> to vector<16xf32>
    %35 = vector.shape_cast %34 : vector<16xf32> to vector<16x1xf32>
    %cst_19 = arith.constant 3.125000e-02 : f32
    %36 = vector.broadcast %cst_19 : f32 to vector<16x1xf32>
    %37 = arith.mulf %35, %36 : vector<16x1xf32>
    %c0_20 = arith.constant 0 : index
    %c0_21 = arith.constant 0 : index
    %38 = vector.load %arg7[%c0_20, %c0_21] : memref<1x128xf32, #tpu.memory_space<vmem>>, vector<1x128xf32>
    %cst_22 = arith.constant 9.99999974E-6 : f32
    %39 = vector.broadcast %cst_22 : f32 to vector<16x1xf32>
    %40 = arith.addf %37, %39 : vector<16x1xf32>
    %41 = math.rsqrt %40 : vector<16x1xf32>
    %42 = vector.broadcast %38 : vector<1x128xf32> to vector<16x128xf32>
    %43 = vector.broadcast %41 : vector<16x1xf32> to vector<16x128xf32>
    %44 = arith.mulf %42, %43 : vector<16x128xf32>
    %45 = arith.mulf %32, %44 : vector<16x128xf32>
    %c0_23 = arith.constant 0 : index
    %c0_24 = arith.constant 0 : index
    %46 = vector.load %arg8[%c0_23, %c0_24] : memref<1x128xf32, #tpu.memory_space<vmem>>, vector<1x128xf32>
    %47 = vector.broadcast %46 : vector<1x128xf32> to vector<16x128xf32>
    %48 = arith.addf %45, %47 : vector<16x128xf32>
    %cst_25 = arith.constant 5.000000e-01 : f32
    %49 = vector.broadcast %cst_25 : f32 to vector<16x128xf32>
    %50 = arith.mulf %49, %48 : vector<16x128xf32>
    %cst_26 = arith.constant 0.707106769 : f32
    %51 = vector.broadcast %cst_26 : f32 to vector<16x128xf32>
    %52 = arith.mulf %48, %51 : vector<16x128xf32>
    %53 = math.erf %52 : vector<16x128xf32>
    %cst_27 = arith.constant 1.000000e+00 : f32
    %54 = vector.broadcast %cst_27 : f32 to vector<16x128xf32>
    %55 = arith.addf %54, %53 : vector<16x128xf32>
    %56 = arith.mulf %50, %55 : vector<16x128xf32>
    %c0_28 = arith.constant 0 : index
    %c0_29 = arith.constant 0 : index
    %57 = vector.load %arg9[%c0_28, %c0_29] : memref<16x128xf32, #tpu.memory_space<vmem>>, vector<16x128xf32>
    tpu.vector_store %arg9[%c0_28, %c0_29], %56 {strides = array<i32>} : memref<16x128xf32, #tpu.memory_space<vmem>>, vector<16x128xf32>,
    return
  }
  func.func @transform_0(%arg0: i32) -> (i32, i32) {
    %c0_i32 = arith.constant 0 : i32
    %c0_i32_0 = arith.constant 0 : i32
    return %arg0, %c0_i32 : i32, i32
  }
  func.func @transform_1(%arg0: i32) -> (i32, i32) {
    %c0_i32 = arith.constant 0 : i32
    %c0_i32_0 = arith.constant 0 : i32
    return %arg0, %c0_i32 : i32, i32
  }
  func.func @transform_2(%arg0: i32) -> (i32, i32) {
    %c0_i32 = arith.constant 0 : i32
    %c0_i32_0 = arith.constant 0 : i32
    %c0_i32_1 = arith.constant 0 : i32
    return %c0_i32, %c0_i32_0 : i32, i32
  }
  func.func @transform_3(%arg0: i32) -> (i32, i32) {
    %c0_i32 = arith.constant 0 : i32
    %c0_i32_0 = arith.constant 0 : i32
    %c0_i32_1 = arith.constant 0 : i32
    return %c0_i32, %c0_i32_0 : i32, i32
  }
  func.func @transform_4(%arg0: i32) -> (i32, i32) {
    %c0_i32 = arith.constant 0 : i32
    %c0_i32_0 = arith.constant 0 : i32
    %c0_i32_1 = arith.constant 0 : i32
    return %c0_i32, %c0_i32_0 : i32, i32
  }
  func.func @transform_5(%arg0: i32) -> (i32, i32) {
    %c0_i32 = arith.constant 0 : i32
    %c0_i32_0 = arith.constant 0 : i32
    %c0_i32_1 = arith.constant 0 : i32
    return %c0_i32, %c0_i32_0 : i32, i32
  }
  func.func @transform_6(%arg0: i32) -> (i32, i32) {
    %c0_i32 = arith.constant 0 : i32
    %c0_i32_0 = arith.constant 0 : i32
    %c0_i32_1 = arith.constant 0 : i32
    return %c0_i32, %c0_i32_0 : i32, i32
  }
  func.func @transform_7(%arg0: i32) -> (i32, i32) {
    %c0_i32 = arith.constant 0 : i32
    %c0_i32_0 = arith.constant 0 : i32
    %c0_i32_1 = arith.constant 0 : i32
    return %c0_i32, %c0_i32_0 : i32, i32
  }
  func.func @transform_8(%arg0: i32) -> (i32, i32) {
    %c0_i32 = arith.constant 0 : i32
    %c0_i32_0 = arith.constant 0 : i32
    return %arg0, %c0_i32 : i32, i32
  }
}

</mosaic_0001>

<llo_original>
// kernel: mlp_ln_act.1
$region0: #{mlp_ln_act.1}
  #allocation0 [shape = 'u32[]', space=smem, size = 0x4, offset = 0x4, fixed_abs, tag = 'smem constant byte address 0x4 - core index']
  #allocation1 [shape = 'u32[144,128]{1,0:T(1,128)}', space=vmem, size = 0x12000, scoped, tag = 'internal scratch']
  %s0 = inlined_call_operand.vmem [shape: f32[32,128], index: 0, kind: input, shape index: {}]
  %s1 = inlined_call_operand.vmem [shape: f32[32,128], index: 1, kind: input, shape index: {}]
  %s2 = inlined_call_operand.vmem [shape: f32[128,128], index: 2, kind: input, shape index: {}]
  %s3 = inlined_call_operand.vmem [shape: f32[1,128], index: 3, kind: input, shape index: {}]
  %s4 = inlined_call_operand.vmem [shape: f32[128,128], index: 4, kind: input, shape index: {}]
  %s5 = inlined_call_operand.vmem [shape: f32[1,128], index: 5, kind: input, shape index: {}]
  %s6 = inlined_call_operand.vmem [shape: f32[1,128], index: 6, kind: input, shape index: {}]
  %s7 = inlined_call_operand.vmem [shape: f32[1,128], index: 7, kind: input, shape index: {}]
  %s8 = inlined_call_operand.vmem [shape: f32[32,128], index: 8, kind: output, shape index: {}]
  %s9 = sld [smem:[#allocation0]]
  $region65: #{mlp_ln_act.1} parent=0
    _
  %s11 = ssub.s32 1, %s9
  %s12 = scalar_select 0, %s11, %s9
  loop: start=0, step=1, limit=4
  $region2: #{mlp_ln_act.1} parent=0 // loop_pre_header
    _
  $region3: #{mlp_ln_act.1} parent=0 // loop_header
    %s14 = sphi 0, %s18
    %p15 = scmp.ge.s32.totalorder %s14, 4
    %s24 = sphi 0, %s26
    %s27 = sphi 0, %s24
    %s28 = sphi 0, %s27
    %s44 = sphi 0, %s28
    %s50 = sphi 0, %s52
    %s53 = sphi 0, %s50
    %s54 = sphi 0, %s53
    %s70 = sphi 0, %s54
    %s74 = sphi 0, %s74
    %s76 = sphi 0, %s74
    %s77 = sphi 0, %s76
    %s91 = sphi 0, %s77
    %s95 = sphi 0, %s95
    %s97 = sphi 0, %s95
    %s98 = sphi 0, %s97
    %s112 = sphi 0, %s98
    %s116 = sphi 0, %s116
    %s118 = sphi 0, %s116
    %s119 = sphi 0, %s118
    %s133 = sphi 0, %s119
    %s137 = sphi 0, %s137
    %s139 = sphi 0, %s137
    %s140 = sphi 0, %s139
    %s154 = sphi 0, %s140
    %s158 = sphi 0, %s158
    %s160 = sphi 0, %s158
    %s161 = sphi 0, %s160
    %s175 = sphi 0, %s161
    %s179 = sphi 0, %s179
    %s181 = sphi 0, %s179
    %s182 = sphi 0, %s181
    %s196 = sphi 0, %s182
    %s202 = sphi 0, %s204
    %s205 = sphi 0, %s202
    %s206 = sphi 0, %s205
    %s222 = sphi 0, %s206
  $region4: #{mlp_ln_act.1} parent=0 // loop_header_branch
    %17 = sbr.rel (%p15) target = $region8
  $region5: #{mlp_ln_act.1} parent=0 // loop_body
    %s19 = ssub.s32 %s14, 1
    %s20 = ssub.s32 %s14, 2
    %s21 = sadd.s32 %s14, 1
    %s22 = ssub.s32 %s14, %s21
    %p23 = scmp.eq.s32.totalorder %s22, 0
    %s25 = sadd.s32 %s24, 1
    %s26 = scalar_select %p23, %s24, %s25
    %p29 = pneg %p23
    %p30 = scmp.eq.s32.totalorder %s14, 1
    %p31 = por %p29, %p30
    %p32 = scmp.ne.s32.totalorder %s24, %s27
    %p33 = scmp.eq.s32.totalorder %s14, 0
    %p34 = por %p32, %p33
    %p35 = scmp.ne.s32.totalorder %s24, %s27
    %p36 = scmp.eq.s32.totalorder %s19, 1
    %p37 = por %p35, %p36
    %p38 = scmp.ne.s32.totalorder %s27, %s28
    %p39 = scmp.eq.s32.totalorder %s19, 0
    %p40 = por %p38, %p39
    %p41 = scmp.ne.s32.totalorder %s27, %s28
    %p42 = scmp.eq.s32.totalorder %s20, 1
    %p43 = por %p41, %p42
    %p45 = scmp.ne.s32.totalorder %s28, %s44
    %p46 = scmp.eq.s32.totalorder %s20, 0
    %p47 = por %p45, %p46
    %s48 = ssub.s32 %s14, %s21
    %p49 = scmp.eq.s32.totalorder %s48, 0
    %s51 = sadd.s32 %s50, 1
    %s52 = scalar_select %p49, %s50, %s51
    %p55 = pneg %p49
    %p56 = scmp.eq.s32.totalorder %s14, 1
    %p57 = por %p55, %p56
    %p58 = scmp.ne.s32.totalorder %s50, %s53
    %p59 = scmp.eq.s32.totalorder %s14, 0
    %p60 = por %p58, %p59
    %p61 = scmp.ne.s32.totalorder %s50, %s53
    %p62 = scmp.eq.s32.totalorder %s19, 1
    %p63 = por %p61, %p62
    %p64 = scmp.ne.s32.totalorder %s53, %s54
    %p65 = scmp.eq.s32.totalorder %s19, 0
    %p66 = por %p64, %p65
    %p67 = scmp.ne.s32.totalorder %s53, %s54
    %p68 = scmp.eq.s32.totalorder %s20, 1
    %p69 = por %p67, %p68
    %p71 = scmp.ne.s32.totalorder %s54, %s70
    %p72 = scmp.eq.s32.totalorder %s20, 0
    %p73 = por %p71, %p72
    %s75 = sadd.s32 %s74, 1
    %p78 = scmp.eq.s32.totalorder %s14, 1
    %p79 = scmp.ne.s32.totalorder %s74, %s76
    %p80 = scmp.eq.s32.totalorder %s14, 0
    %p81 = por %p79, %p80
    %p82 = scmp.ne.s32.totalorder %s74, %s76
    %p83 = scmp.eq.s32.totalorder %s19, 1
    %p84 = por %p82, %p83
    %p85 = scmp.ne.s32.totalorder %s76, %s77
    %p86 = scmp.eq.s32.totalorder %s19, 0
    %p87 = por %p85, %p86
    %p88 = scmp.ne.s32.totalorder %s76, %s77
    %p89 = scmp.eq.s32.totalorder %s20, 1
    %p90 = por %p88, %p89
    %p92 = scmp.ne.s32.totalorder %s77, %s91
    %p93 = scmp.eq.s32.totalorder %s20, 0
    %p94 = por %p92, %p93
    %s96 = sadd.s32 %s95, 1
    %p99 = scmp.eq.s32.totalorder %s14, 1
    %p100 = scmp.ne.s32.totalorder %s95, %s97
    %p101 = scmp.eq.s32.totalorder %s14, 0
    %p102 = por %p100, %p101
    %p103 = scmp.ne.s32.totalorder %s95, %s97
    %p104 = scmp.eq.s32.totalorder %s19, 1
    %p105 = por %p103, %p104
    %p106 = scmp.ne.s32.totalorder %s97, %s98
    %p107 = scmp.eq.s32.totalorder %s19, 0
    %p108 = por %p106, %p107
    %p109 = scmp.ne.s32.totalorder %s97, %s98
    %p110 = scmp.eq.s32.totalorder %s20, 1
    %p111 = por %p109, %p110
    %p113 = scmp.ne.s32.totalorder %s98, %s112
    %p114 = scmp.eq.s32.totalorder %s20, 0
    %p115 = por %p113, %p114
    %s117 = sadd.s32 %s116, 1
    %p120 = scmp.eq.s32.totalorder %s14, 1
    %p121 = scmp.ne.s32.totalorder %s116, %s118
    %p122 = scmp.eq.s32.totalorder %s14, 0
    %p123 = por %p121, %p122
    %p124 = scmp.ne.s32.totalorder %s116, %s118
    %p125 = scmp.eq.s32.totalorder %s19, 1
    %p126 = por %p124, %p125
    %p127 = scmp.ne.s32.totalorder %s118, %s119
    %p128 = scmp.eq.s32.totalorder %s19, 0
    %p129 = por %p127, %p128
    %p130 = scmp.ne.s32.totalorder %s118, %s119
    %p131 = scmp.eq.s32.totalorder %s20, 1
    %p132 = por %p130, %p131
    %p134 = scmp.ne.s32.totalorder %s119, %s133
    %p135 = scmp.eq.s32.totalorder %s20, 0
    %p136 = por %p134, %p135
    %s138 = sadd.s32 %s137, 1
    %p141 = scmp.eq.s32.totalorder %s14, 1
    %p142 = scmp.ne.s32.totalorder %s137, %s139
    %p143 = scmp.eq.s32.totalorder %s14, 0
    %p144 = por %p142, %p143
    %p145 = scmp.ne.s32.totalorder %s137, %s139
    %p146 = scmp.eq.s32.totalorder %s19, 1
    %p147 = por %p145, %p146
    %p148 = scmp.ne.s32.totalorder %s139, %s140
    %p149 = scmp.eq.s32.totalorder %s19, 0
    %p150 = por %p148, %p149
    %p151 = scmp.ne.s32.totalorder %s139, %s140
    %p152 = scmp.eq.s32.totalorder %s20, 1
    %p153 = por %p151, %p152
    %p155 = scmp.ne.s32.totalorder %s140, %s154
    %p156 = scmp.eq.s32.totalorder %s20, 0
    %p157 = por %p155, %p156
    %s159 = sadd.s32 %s158, 1
    %p162 = scmp.eq.s32.totalorder %s14, 1
    %p163 = scmp.ne.s32.totalorder %s158, %s160
    %p164 = scmp.eq.s32.totalorder %s14, 0
    %p165 = por %p163, %p164
    %p166 = scmp.ne.s32.totalorder %s158, %s160
    %p167 = scmp.eq.s32.totalorder %s19, 1
    %p168 = por %p166, %p167
    %p169 = scmp.ne.s32.totalorder %s160, %s161
    %p170 = scmp.eq.s32.totalorder %s19, 0
    %p171 = por %p169, %p170
    %p172 = scmp.ne.s32.totalorder %s160, %s161
    %p173 = scmp.eq.s32.totalorder %s20, 1
    %p174 = por %p172, %p173
    %p176 = scmp.ne.s32.totalorder %s161, %s175
    %p177 = scmp.eq.s32.totalorder %s20, 0
    %p178 = por %p176, %p177
    %s180 = sadd.s32 %s179, 1
    %p183 = scmp.eq.s32.totalorder %s14, 1
    %p184 = scmp.ne.s32.totalorder %s179, %s181
    %p185 = scmp.eq.s32.totalorder %s14, 0
    %p186 = por %p184, %p185
    %p187 = scmp.ne.s32.totalorder %s179, %s181
    %p188 = scmp.eq.s32.totalorder %s19, 1
    %p189 = por %p187, %p188
    %p190 = scmp.ne.s32.totalorder %s181, %s182
    %p191 = scmp.eq.s32.totalorder %s19, 0
    %p192 = por %p190, %p191
    %p193 = scmp.ne.s32.totalorder %s181, %s182
    %p194 = scmp.eq.s32.totalorder %s20, 1
    %p195 = por %p193, %p194
    %p197 = scmp.ne.s32.totalorder %s182, %s196
    %p198 = scmp.eq.s32.totalorder %s20, 0
    %p199 = por %p197, %p198
    %s200 = ssub.s32 %s14, %s21
    %p201 = scmp.eq.s32.totalorder %s200, 0
    %s203 = sadd.s32 %s202, 1
    %s204 = scalar_select %p201, %s202, %s203
    %p207 = pneg %p201
    %p208 = scmp.eq.s32.totalorder %s14, 1
    %p209 = por %p207, %p208
    %p210 = scmp.ne.s32.totalorder %s202, %s205
    %p211 = scmp.eq.s32.totalorder %s14, 0
    %p212 = por %p210, %p211
    %p213 = scmp.ne.s32.totalorder %s202, %s205
    %p214 = scmp.eq.s32.totalorder %s19, 1
    %p215 = por %p213, %p214
    %p216 = scmp.ne.s32.totalorder %s205, %s206
    %p217 = scmp.eq.s32.totalorder %s19, 0
    %p218 = por %p216, %p217
    %p219 = scmp.ne.s32.totalorder %s205, %s206
    %p220 = scmp.eq.s32.totalorder %s20, 1
    %p221 = por %p219, %p220
    %p223 = scmp.ne.s32.totalorder %s206, %s222
    %p224 = scmp.eq.s32.totalorder %s20, 0
    %p225 = por %p223, %p224
    %p226 = scmp.le.s32.totalorder 1, %s14
    %p227 = scmp.lt.s32.totalorder %s14, 3
    %p228 = pnand %p226, %p227
    %p229 = pneg %p228
    // Predicated region
    $region9: #{mlp_ln_act.1} parent=5 // pred_check
      _
    $region10: #{mlp_ln_act.1} parent=5 // pred_check_branch
      %231 = sbr.rel (%p228) target = $region12
    $region11: #{mlp_ln_act.1} parent=5 // pred_region
      %s232 = ssub.s32 %s14, 1
      // Predicated region
      $region13: #{mlp_ln_act.1} parent=11 // pred_check
        %p233 = pneg %p87
      $region14: #{mlp_ln_act.1} parent=11 // pred_check_branch
        %235 = sbr.rel (%p233) target = $region16
      $region15: #{mlp_ln_act.1} parent=11 // pred_region
        _
      $region16: #{mlp_ln_act.1} parent=11 // pred_fallthru
        _
      // Predicated region
      $region17: #{mlp_ln_act.1} parent=11 // pred_check
        %p236 = pneg %p108
      $region18: #{mlp_ln_act.1} parent=11 // pred_check_branch
        %238 = sbr.rel (%p236) target = $region20
      $region19: #{mlp_ln_act.1} parent=11 // pred_region
        _
      $region20: #{mlp_ln_act.1} parent=11 // pred_fallthru
        _
      // Predicated region
      $region21: #{mlp_ln_act.1} parent=11 // pred_check
        %p239 = pneg %p129
      $region22: #{mlp_ln_act.1} parent=11 // pred_check_branch
        %241 = sbr.rel (%p239) target = $region24
      $region23: #{mlp_ln_act.1} parent=11 // pred_region
        _
      $region24: #{mlp_ln_act.1} parent=11 // pred_fallthru
        _
      // Predicated region
      $region25: #{mlp_ln_act.1} parent=11 // pred_check
        %p242 = pneg %p150
      $region26: #{mlp_ln_act.1} parent=11 // pred_check_branch
        %244 = sbr.rel (%p242) target = $region28
      $region27: #{mlp_ln_act.1} parent=11 // pred_region
        _
      $region28: #{mlp_ln_act.1} parent=11 // pred_fallthru
        _
      // Predicated region
      $region29: #{mlp_ln_act.1} parent=11 // pred_check
        %p245 = pneg %p171
      $region30: #{mlp_ln_act.1} parent=11 // pred_check_branch
        %247 = sbr.rel (%p245) target = $region32
      $region31: #{mlp_ln_act.1} parent=11 // pred_region
        _
      $region32: #{mlp_ln_act.1} parent=11 // pred_fallthru
        _
      // Predicated region
      $region33: #{mlp_ln_act.1} parent=11 // pred_check
        %p248 = pneg %p192
      $region34: #{mlp_ln_act.1} parent=11 // pred_check_branch
        %250 = sbr.rel (%p248) target = $region36
      $region35: #{mlp_ln_act.1} parent=11 // pred_region
        _
      $region36: #{mlp_ln_act.1} parent=11 // pred_fallthru
        _
    $region12: #{mlp_ln_act.1} parent=5 // pred_fallthru
      _
    %p251 = scmp.lt.s32.totalorder %s14, 2
    // Predicated region
    $region37: #{mlp_ln_act.1} parent=5 // pred_check
      %p252 = pneg %p251
    $region38: #{mlp_ln_act.1} parent=5 // pred_check_branch
      %254 = sbr.rel (%p252) target = $region40
    $region39: #{mlp_ln_act.1} parent=5 // pred_region
      // Predicated region
      $region41: #{mlp_ln_act.1} parent=39 // pred_check
        %p255 = pneg %p34
      $region42: #{mlp_ln_act.1} parent=39 // pred_check_branch
        %257 = sbr.rel (%p255) target = $region44
      $region43: #{mlp_ln_act.1} parent=39 // pred_region
        %s258 = smul.u32 2, %s14
        %p259 = scmp.lt.s32.totalorder %s258, 3
        %s260 = scalar_select %p259, %s258, 3
        %s261 = smul.addr %s260, 8
        %s262 = scalar_lea.vmem %s0, %s261
        %s263 = smul.u32 2, %s14
      $region44: #{mlp_ln_act.1} parent=39 // pred_fallthru
        _
      // Predicated region
      $region45: #{mlp_ln_act.1} parent=39 // pred_check
        %p264 = pneg %p60
      $region46: #{mlp_ln_act.1} parent=39 // pred_check_branch
        %266 = sbr.rel (%p264) target = $region48
      $region47: #{mlp_ln_act.1} parent=39 // pred_region
        %s267 = smul.u32 2, %s14
        %p268 = scmp.lt.s32.totalorder %s267, 3
        %s269 = scalar_select %p268, %s267, 3
        %s270 = smul.addr %s269, 8
        %s271 = scalar_lea.vmem %s1, %s270
        %s272 = smul.u32 2, %s14
      $region48: #{mlp_ln_act.1} parent=39 // pred_fallthru
        _
    $region40: #{mlp_ln_act.1} parent=5 // pred_fallthru
      _
    %p273 = scmp.le.s32.totalorder 1, %s14
    %p274 = scmp.lt.s32.totalorder %s14, 3
    %p275 = pnand %p273, %p274
    %p276 = pneg %p275
    // Predicated region
    $region49: #{mlp_ln_act.1} parent=5 // pred_check
      _
    $region50: #{mlp_ln_act.1} parent=5 // pred_check_branch
      %278 = sbr.rel (%p275) target = $region52
    $region51: #{mlp_ln_act.1} parent=5 // pred_region
      %s279 = ssub.s32 %s14, 1
      %s280 = smul.u32 2, %s19
      %p281 = scmp.lt.s32.totalorder %s280, 3
      %s282 = scalar_select %p281, %s280, 3
      %s283 = smul.addr %s282, 8
      %s284 = scalar_lea.vmem %s0, %s283
      %p285 = pneg %p40
      %p286 = pneg %p37
      %s287 = smul.u32 2, %s19
      %p288 = scmp.lt.s32.totalorder %s287, 3
      %s289 = scalar_select %p288, %s287, 3
      %s290 = smul.addr %s289, 8
      %s291 = scalar_lea.vmem %s1, %s290
      %p292 = pneg %p66
      %p293 = pneg %p63
      %p294 = pneg %p87
      %p295 = pneg %p84
      %p296 = pneg %p108
      %p297 = pneg %p105
      %p298 = pneg %p129
      %p299 = pneg %p126
      %p300 = pneg %p150
      %p301 = pneg %p147
      %p302 = pneg %p171
      %p303 = pneg %p168
      %p304 = pneg %p192
      %p305 = pneg %p189
      %p306 = pneg %p218
      %p307 = pneg %p215
      %s308 = smul.u32 2, %s19
      %p309 = scmp.lt.s32.totalorder %s308, 3
      %s310 = scalar_select %p309, %s308, 3
      %s311 = smul.addr %s310, 8
      %s312 = scalar_lea.vmem %s8, %s311
      %s313 = smul.u32 2, %s19
      %p314 = scmp.lt.s32.totalorder %s313, 3
      %s315 = scalar_select %p314, %s313, 3
      %s316 = smul.addr %s315, 8
      %s317 = scalar_lea.vmem %s0, %s316
      %s318 = smul.u32 2, %s19
      %s319 = smul.u32 2, %s19
      %p320 = scmp.lt.s32.totalorder %s319, 3
      %s321 = scalar_select %p320, %s319, 3
      %s322 = smul.addr %s321, 8
      %s323 = scalar_lea.vmem %s1, %s322
      %s324 = smul.u32 2, %s19
      %s325 = smul.u32 2, %s19
      %p326 = scmp.lt.s32.totalorder %s325, 3
      %s327 = scalar_select %p326, %s325, 3
      %s328 = smul.addr %s327, 8
      %s329 = scalar_lea.vmem %s8, %s328
      %s330 = smul.u32 2, %s19
      %v331 = vld [vmem:[%s317] sm:$0xff]
      %v332 = vld [vmem:[%s317 + $0x8] sm:$0xff]
      %v333 = vld [vmem:[%s2] sm:$0xff]
      %v334 = vld [vmem:[%s2 + $0x8] sm:$0xff]
      %v335 = vld [vmem:[%s2 + $0x10] sm:$0xff]
      %v336 = vld [vmem:[%s2 + $0x18] sm:$0xff]
      %v337 = vld [vmem:[%s2 + $0x20] sm:$0xff]
      %v338 = vld [vmem:[%s2 + $0x28] sm:$0xff]
      %v339 = vld [vmem:[%s2 + $0x30] sm:$0xff]
      %v340 = vld [vmem:[%s2 + $0x38] sm:$0xff]
      %v341 = vld [vmem:[%s2 + $0x40] sm:$0xff]
      %v342 = vld [vmem:[%s2 + $0x48] sm:$0xff]
      %v343 = vld [vmem:[%s2 + $0x50] sm:$0xff]
      %v344 = vld [vmem:[%s2 + $0x58] sm:$0xff]
      %v345 = vld [vmem:[%s2 + $0x60] sm:$0xff]
      %v346 = vld [vmem:[%s2 + $0x68] sm:$0xff]
      %v347 = vld [vmem:[%s2 + $0x70] sm:$0xff]
      %v348 = vld [vmem:[%s2 + $0x78] sm:$0xff]
      %v349 = vld [vmem:[%s3] sm:$0x1]
      %v351 = vlaneseq
      %v352 = vshrl.u32 %v351, 7
      %v353 = vsub.s32 0, %v352
      %v354 = vrot.slane %v349, %v353
      %356 = vmatprep.subr.mxu0 0.0
      %357 = vmatpush1.msra.mxu0 %v333
      %358 = vmatprep.subr.mxu0 0.0
      %359 = vmatpush1.msra.mxu0 %v334
      %360 = vmatprep.subr.mxu0 0.0
      %361 = vmatpush1.msra.mxu0 %v335
      %362 = vmatprep.subr.mxu0 0.0
      %363 = vmatpush1.msra.mxu0 %v336
      %364 = vmatprep.subr.mxu0 0.0
      %365 = vmatpush1.msra.mxu0 %v337
      %366 = vmatprep.subr.mxu0 0.0
      %367 = vmatpush1.msra.mxu0 %v338
      %368 = vmatprep.subr.mxu0 0.0
      %369 = vmatpush1.msra.mxu0 %v339
      %370 = vmatprep.subr.mxu0 0.0
      %371 = vmatpush1.msra.mxu0 %v340
      %372 = vmatprep.subr.mxu0 0.0
      %373 = vmatpush1.msra.mxu0 %v341
      %374 = vmatprep.subr.mxu0 0.0
      %375 = vmatpush1.msra.mxu0 %v342
      %376 = vmatprep.subr.mxu0 0.0
      %377 = vmatpush1.msra.mxu0 %v343
      %378 = vmatprep.subr.mxu0 0.0
      %379 = vmatpush1.msra.mxu0 %v344
      %380 = vmatprep.subr.mxu0 0.0
      %381 = vmatpush1.msra.mxu0 %v345
      %382 = vmatprep.subr.mxu0 0.0
      %383 = vmatpush1.msra.mxu0 %v346
      %384 = vmatprep.subr.mxu0 0.0
      %385 = vmatpush1.msra.mxu0 %v347
      %386 = vmatprep.subr.mxu0 0.0
      %387 = vmatpush1.msra.mxu0 %v348
      %388 = vmatprep.subr.mxu0 0.0
      %389 = vmatpush1.msra.mxu0 0.0
      %390 = vmatprep.subr.mxu0 0.0
      %391 = vmatpush1.msra.mxu0 0.0
      %392 = vmatprep.subr.mxu0 0.0
      %393 = vmatpush1.msra.mxu0 0.0
      %394 = vmatprep.subr.mxu0 0.0
      %395 = vmatpush1.msra.mxu0 0.0
      %396 = vmatprep.subr.mxu0 0.0
      %397 = vmatpush1.msra.mxu0 0.0
      %398 = vmatprep.subr.mxu0 0.0
      %399 = vmatpush1.msra.mxu0 0.0
      %400 = vmatprep.subr.mxu0 0.0
      %401 = vmatpush1.msra.mxu0 0.0
      %402 = vmatprep.subr.mxu0 0.0
      %403 = vmatpush1.msra.mxu0 0.0
      %404 = vmatprep.subr.mxu0 0.0
      %405 = vmatpush1.msra.mxu0 0.0
      %406 = vmatprep.subr.mxu0 0.0
      %407 = vmatpush1.msra.mxu0 0.0
      %408 = vmatprep.subr.mxu0 0.0
      %409 = vmatpush1.msra.mxu0 0.0
      %410 = vmatprep.subr.mxu0 0.0
      %411 = vmatpush1.msra.mxu0 0.0
      %412 = vmatprep.subr.mxu0 0.0
      %413 = vmatpush1.msra.mxu0 0.0
      %414 = vmatprep.subr.mxu0 0.0
      %415 = vmatpush1.msra.mxu0 0.0
      %416 = vmatprep.subr.mxu0 0.0
      %417 = vmatpush1.msra.mxu0 0.0
      %418 = vmatprep.subr.mxu0 0.0
      %419 = vmatpush1.msra.mxu0 0.0
      %420 = vmatprep.mubr.f32.mxu0 0.0
      %421 = vmatmul.mubr.f32.gmra.mrb[0].mxu0 %v331
      %v422 = vpop.f32.mrb[0].mxu0
      %v423 = vadd.f32 %v354, %v422
      %v424 = vpop.f32.mrb[0].mxu0
      %425 = vmatprep.mubr.f32.mxu0 0.0
      %426 = vmatmul.mubr.f32.gmra.mrb[0].mxu0 %v332
      %v427 = vpop.f32.mrb[0].mxu0
      %v428 = vadd.f32 %v354, %v427
      %v429 = vpop.f32.mrb[0].mxu0
      %430 = vdwg.mxu0
      %v431 = vld [vmem:[%s323] sm:$0xff]
      %v432 = vld [vmem:[%s323 + $0x8] sm:$0xff]
      %v433 = vmul.f32 %v431, 0.5
      %v434 = vmul.f32 %v432, 0.5
      %v435 = vmul.f32 %v431, 0.70710677
      %v436 = vmul.f32 %v432, 0.70710677
      %v437 = verf.f32.pop %v435
      %v438 = verf.f32.pop %v436
      %v439 = vadd.f32 %v437, 1.0
      %v440 = vadd.f32 %v438, 1.0
      %v441 = vmul.f32 %v433, %v439
      %v442 = vmul.f32 %v434, %v440
      %v443 = vld [vmem:[%s4] sm:$0xff]
      %v444 = vld [vmem:[%s4 + $0x8] sm:$0xff]
      %v445 = vld [vmem:[%s4 + $0x10] sm:$0xff]
      %v446 = vld [vmem:[%s4 + $0x18] sm:$0xff]
      %v447 = vld [vmem:[%s4 + $0x20] sm:$0xff]
      %v448 = vld [vmem:[%s4 + $0x28] sm:$0xff]
      %v449 = vld [vmem:[%s4 + $0x30] sm:$0xff]
      %v450 = vld [vmem:[%s4 + $0x38] sm:$0xff]
      %v451 = vld [vmem:[%s4 + $0x40] sm:$0xff]
      %v452 = vld [vmem:[%s4 + $0x48] sm:$0xff]
      %v453 = vld [vmem:[%s4 + $0x50] sm:$0xff]
      %v454 = vld [vmem:[%s4 + $0x58] sm:$0xff]
      %v455 = vld [vmem:[%s4 + $0x60] sm:$0xff]
      %v456 = vld [vmem:[%s4 + $0x68] sm:$0xff]
      %v457 = vld [vmem:[%s4 + $0x70] sm:$0xff]
      %v458 = vld [vmem:[%s4 + $0x78] sm:$0xff]
      %v459 = vld [vmem:[%s5] sm:$0x1]
      %v461 = vlaneseq
      %v462 = vshrl.u32 %v461, 7
      %v463 = vsub.s32 0, %v462
      %v464 = vrot.slane %v459, %v463
      %466 = vmatprep.subr.mxu0 0.0
      %467 = vmatpush1.msra.mxu0 %v443
      %468 = vmatprep.subr.mxu0 0.0
      %469 = vmatpush1.msra.mxu0 %v444
      %470 = vmatprep.subr.mxu0 0.0
      %471 = vmatpush1.msra.mxu0 %v445
      %472 = vmatprep.subr.mxu0 0.0
      %473 = vmatpush1.msra.mxu0 %v446
      %474 = vmatprep.subr.mxu0 0.0
      %475 = vmatpush1.msra.mxu0 %v447
      %476 = vmatprep.subr.mxu0 0.0
      %477 = vmatpush1.msra.mxu0 %v448
      %478 = vmatprep.subr.mxu0 0.0
      %479 = vmatpush1.msra.mxu0 %v449
      %480 = vmatprep.subr.mxu0 0.0
      %481 = vmatpush1.msra.mxu0 %v450
      %482 = vmatprep.subr.mxu0 0.0
      %483 = vmatpush1.msra.mxu0 %v451
      %484 = vmatprep.subr.mxu0 0.0
      %485 = vmatpush1.msra.mxu0 %v452
      %486 = vmatprep.subr.mxu0 0.0
      %487 = vmatpush1.msra.mxu0 %v453
      %488 = vmatprep.subr.mxu0 0.0
      %489 = vmatpush1.msra.mxu0 %v454
      %490 = vmatprep.subr.mxu0 0.0
      %491 = vmatpush1.msra.mxu0 %v455
      %492 = vmatprep.subr.mxu0 0.0
      %493 = vmatpush1.msra.mxu0 %v456
      %494 = vmatprep.subr.mxu0 0.0
      %495 = vmatpush1.msra.mxu0 %v457
      %496 = vmatprep.subr.mxu0 0.0
      %497 = vmatpush1.msra.mxu0 %v458
      %498 = vmatprep.subr.mxu0 0.0
      %499 = vmatpush1.msra.mxu0 0.0
      %500 = vmatprep.subr.mxu0 0.0
      %501 = vmatpush1.msra.mxu0 0.0
      %502 = vmatprep.subr.mxu0 0.0
      %503 = vmatpush1.msra.mxu0 0.0
      %504 = vmatprep.subr.mxu0 0.0
      %505 = vmatpush1.msra.mxu0 0.0
      %506 = vmatprep.subr.mxu0 0.0
      %507 = vmatpush1.msra.mxu0 0.0
      %508 = vmatprep.subr.mxu0 0.0
      %509 = vmatpush1.msra.mxu0 0.0
      %510 = vmatprep.subr.mxu0 0.0
      %511 = vmatpush1.msra.mxu0 0.0
      %512 = vmatprep.subr.mxu0 0.0
      %513 = vmatpush1.msra.mxu0 0.0
      %514 = vmatprep.subr.mxu0 0.0
      %515 = vmatpush1.msra.mxu0 0.0
      %516 = vmatprep.subr.mxu0 0.0
      %517 = vmatpush1.msra.mxu0 0.0
      %518 = vmatprep.subr.mxu0 0.0
      %519 = vmatpush1.msra.mxu0 0.0
      %520 = vmatprep.subr.mxu0 0.0
      %521 = vmatpush1.msra.mxu0 0.0
      %522 = vmatprep.subr.mxu0 0.0
      %523 = vmatpush1.msra.mxu0 0.0
      %524 = vmatprep.subr.mxu0 0.0
      %525 = vmatpush1.msra.mxu0 0.0
      %526 = vmatprep.subr.mxu0 0.0
      %527 = vmatpush1.msra.mxu0 0.0
      %528 = vmatprep.subr.mxu0 0.0
      %529 = vmatpush1.msra.mxu0 0.0
      %530 = vmatprep.mubr.f32.mxu0 0.0
      %531 = vmatmul.mubr.f32.gmra.mrb[0].mxu0 %v441
      %v532 = vpop.f32.mrb[0].mxu0
      %v533 = vadd.f32 %v464, %v532
      %v534 = vpop.f32.mrb[0].mxu0
      %535 = vmatprep.mubr.f32.mxu0 0.0
      %536 = vmatmul.mubr.f32.gmra.mrb[0].mxu0 %v442
      %v537 = vpop.f32.mrb[0].mxu0
      %v538 = vadd.f32 %v464, %v537
      %v539 = vpop.f32.mrb[0].mxu0
      %540 = vdwg.mxu0
      %v541 = vmul.f32 %v423, %v533
      %v542 = vmul.f32 %v428, %v538
      %v543 = vadd.f32 %v423, %v541
      %v544 = vadd.f32 %v428, %v542
      %545 = vadd.xlane.f32.xlu0 %v543
      %v546 = vpop.xlane.xlu0 %545
      %547 = vadd.xlane.f32.xlu0 %v544
      %v548 = vpop.xlane.xlu0 %547
      %v549 = vmul.f32 %v546, 0.03125
      %v550 = vmul.f32 %v548, 0.03125
      %v551 = vsub.f32 %v543, %v549
      %v552 = vsub.f32 %v544, %v550
      %v553 = vlaneseq
      %v554 = vand.u32 %v553, 127
      %vm555 = vcmp.lt.s32.totalorder %v554, 32
      %v556 = vsel %vm555, %v551, 0.0
      %v557 = vsel %vm555, %v552, 0.0
      %v558 = vmul.f32 %v556, %v556
      %v559 = vmul.f32 %v557, %v557
      %560 = vadd.xlane.f32.xlu0 %v558
      %v561 = vpop.xlane.xlu0 %560
      %562 = vadd.xlane.f32.xlu0 %v559
      %v563 = vpop.xlane.xlu0 %562
      %v564 = vmul.f32 %v561, 0.03125
      %v565 = vmul.f32 %v563, 0.03125
      %v566 = vld [vmem:[%s6] sm:$0x1]
      %v567 = vadd.f32 %v564, 1e-05
      %v568 = vadd.f32 %v565, 1e-05
      %v569 = vrsqrt.pop %v567
      %v570 = vrsqrt.pop %v568
      %v572 = vlaneseq
      %v573 = vshrl.u32 %v572, 7
      %v574 = vsub.s32 0, %v573
      %v575 = vrot.slane %v566, %v574
      %v577 = vmul.f32 %v575, %v569
      %v578 = vmul.f32 %v575, %v570
      %v579 = vmul.f32 %v556, %v577
      %v580 = vmul.f32 %v557, %v578
      %v581 = vld [vmem:[%s7] sm:$0x1]
      %v583 = vlaneseq
      %v584 = vshrl.u32 %v583, 7
      %v585 = vsub.s32 0, %v584
      %v586 = vrot.slane %v581, %v585
      %v588 = vadd.f32 %v579, %v586
      %v589 = vadd.f32 %v580, %v586
      %v590 = vmul.f32 %v588, 0.5
      %v591 = vmul.f32 %v589, 0.5
      %v592 = vmul.f32 %v588, 0.70710677
      %v593 = vmul.f32 %v589, 0.70710677
      %v594 = verf.f32.pop %v592
      %v595 = verf.f32.pop %v593
      %v596 = vadd.f32 %v594, 1.0
      %v597 = vadd.f32 %v595, 1.0
      %v598 = vmul.f32 %v590, %v596
      %v599 = vmul.f32 %v591, %v597
      %600 = vst [vmem:[%s329] sm:$0xff] %v598
      %601 = vst [vmem:[%s329 + $0x8] sm:$0xff] %v599
      %s602 = smul.u32 2, %s19
      %p603 = scmp.lt.s32.totalorder %s602, 3
      %s604 = scalar_select %p603, %s602, 3
      %s605 = smul.addr %s604, 8
      %s606 = scalar_lea.vmem %s8, %s605
      // Predicated region
      $region53: #{mlp_ln_act.1} parent=51 // pred_check
        %p607 = pneg %p215
      $region54: #{mlp_ln_act.1} parent=51 // pred_check_branch
        %609 = sbr.rel (%p607) target = $region56
      $region55: #{mlp_ln_act.1} parent=51 // pred_region
        %s610 = smul.u32 2, %s19
      $region56: #{mlp_ln_act.1} parent=51 // pred_fallthru
        _
    $region52: #{mlp_ln_act.1} parent=5 // pred_fallthru
      _
    %p611 = scmp.le.s32.totalorder 2, %s14
    // Predicated region
    $region57: #{mlp_ln_act.1} parent=5 // pred_check
      %p612 = pneg %p611
    $region58: #{mlp_ln_act.1} parent=5 // pred_check_branch
      %614 = sbr.rel (%p612) target = $region60
    $region59: #{mlp_ln_act.1} parent=5 // pred_region
      %s615 = ssub.s32 %s14, 2
      // Predicated region
      $region61: #{mlp_ln_act.1} parent=59 // pred_check
        %p616 = pneg %p221
      $region62: #{mlp_ln_act.1} parent=59 // pred_check_branch
        %618 = sbr.rel (%p616) target = $region64
      $region63: #{mlp_ln_act.1} parent=59 // pred_region
        %s619 = smul.u32 2, %s20
        %p620 = scmp.lt.s32.totalorder %s619, 3
        %s621 = scalar_select %p620, %s619, 3
        %s622 = smul.addr %s621, 8
        %s623 = scalar_lea.vmem %s8, %s622
      $region64: #{mlp_ln_act.1} parent=59 // pred_fallthru
        _
    $region60: #{mlp_ln_act.1} parent=5 // pred_fallthru
      _
  $region6: #{mlp_ln_act.1} parent=0 // loop_footer
    %s18 = sadd.s32 1, %s14
  $region7: #{mlp_ln_act.1} parent=0 // loop_footer_branch
    %13 = sbr.rel target = $region3
  $region8: #{mlp_ln_act.1} parent=0 // loop_exit
    _

</llo_original>
